<compile_context>
chip_gen: v5e
topology: v5e:2x2
jax: 0.10.0
libtpu: 0.0.40
codegen_flags: <defaults>
</compile_context>

<pallas_src>
import functools

import jax
import jax.numpy as jnp
from jax.experimental import pallas as pl
from jax.experimental.pallas import tpu as pltpu


# ---------------------------------------------------------------------------
# helpers
# ---------------------------------------------------------------------------
def _round_up(x, m):
    return ((x + m - 1) // m) * m


def _pad2d(x, rows, cols):
    r, c = x.shape
    return jnp.pad(x, ((0, rows - r), (0, cols - c)))


def _pad_vec(v, n):
    return jnp.pad(v, (0, n - v.shape[0]))


# ---------------------------------------------------------------------------
# Fused kernel.
#   grid = (num_batch_tiles, n_mm)  where n_mm = 1 (projection) + layer_to_extract
#   encoder layers.  For each batch tile, the hidden state (tm, Hp) stays resident in
#   a VMEM scratch across the (sequential) layer axis.  On the last layer the mean
#   over time + classifier epilogue writes the (batch_tile, Cp) logits block.
# ---------------------------------------------------------------------------
def _ser_fused_kernel(x_ref, wp_ref, bp_ref, we_ref, be_ref,
                      w1_ref, b1_ref, w2_ref, b2_ref,
                      o_ref, h_ref, *, batch_tile, seq, hidden_pad):
    l = pl.program_id(1)
    n_mm = pl.num_programs(1)

    # layer 0: frame projection  h = gelu(x @ Wp + bp)
    @pl.when(l == 0)
    def _():
        y = jnp.dot(x_ref[...], wp_ref[...], preferred_element_type=jnp.float32)
        h_ref[...] = jax.nn.gelu(y + bp_ref[...], approximate=True).astype(h_ref.dtype)

    # layers 1..n_mm-1: synthetic encoder layer  h = gelu(h @ We[l-1] + be[l-1])
    @pl.when(l > 0)
    def _():
        y = jnp.dot(h_ref[...], we_ref[0], preferred_element_type=jnp.float32)
        h_ref[...] = jax.nn.gelu(y + be_ref[0], approximate=True).astype(h_ref.dtype)

    # epilogue on the last layer: mean over time (f32, XLU sublane reduce) + classifier
    @pl.when(l == n_mm - 1)
    def _():
        h = h_ref[...].astype(jnp.float32)                                # (tm, Hp)
        pooled = h.reshape(batch_tile, seq, hidden_pad).sum(axis=1) * (1.0 / seq)
        z = jnp.dot(pooled.astype(jnp.bfloat16), w1_ref[...],
                    preferred_element_type=jnp.float32)
        z = jnp.maximum(z + b1_ref[...], 0.0)                             # ReLU in f32
        logits = jnp.dot(z.astype(jnp.bfloat16), w2_ref[...],
                         preferred_element_type=jnp.float32)
        o_ref[...] = (logits + b2_ref[...]).astype(o_ref.dtype)


# ---------------------------------------------------------------------------
# Parameter packing: zero-pad every matrix to 128-lane multiples, stack only the
# first `layer_to_extract` encoder layers (dead layers dropped), cast matmul
# operands to bf16.  Projection keeps its own (Fp, Hp) shape (no shared square pad).
# ---------------------------------------------------------------------------
def pack_params(params, layer_to_extract):
    frame = params["frame"]
    H = params["w_proj"].shape[1]
    Hc = params["w_c1"].shape[1]
    C = params["w_c2"].shape[1]
    Fp = _round_up(frame, 128)   # framed-audio lane width (projection input)
    Hp = _round_up(H, 128)       # hidden width
    Hcp = _round_up(Hc, 128)
    Cp = _round_up(C, 128)

    n_enc_used = min(layer_to_extract, len(params["enc_w"]))
    if n_enc_used > 0:
        w_enc = jnp.stack([_pad2d(params["enc_w"][i], Hp, Hp) for i in range(n_enc_used)])
        b_enc = jnp.stack([_pad_vec(params["enc_b"][i], Hp) for i in range(n_enc_used)])[:, None, :]
    else:
        # dummy block (never read: the l>0 branch never fires) so BlockSpec stays valid
        w_enc = jnp.zeros((1, Hp, Hp), jnp.float32)
        b_enc = jnp.zeros((1, 1, Hp), jnp.float32)

    return {
        "frame": frame, "Fp": Fp, "Hp": Hp, "Hcp": Hcp, "Cp": Cp, "C": C,
        "n_enc_used": n_enc_used,
        "w_proj": _pad2d(params["w_proj"], Fp, Hp).astype(jnp.bfloat16),   # (Fp, Hp)
        "b_proj": _pad_vec(params["b_proj"], Hp)[None, :],                 # (1, Hp)  f32
        "w_enc": w_enc.astype(jnp.bfloat16),                               # (n, Hp, Hp)
        "b_enc": b_enc,                                                    # (n, 1, Hp) f32
        "w_c1": _pad2d(params["w_c1"], Hp, Hcp).astype(jnp.bfloat16),
        "b_c1": _pad_vec(params["b_c1"], Hcp)[None, :],                    # (1, Hcp) f32
        "w_c2": _pad2d(params["w_c2"], Hcp, Cp).astype(jnp.bfloat16),
        "b_c2": _pad_vec(params["b_c2"], Cp)[None, :],                     # (1, Cp)  f32
    }


# ---------------------------------------------------------------------------
# SERModel forward: framing/padding glue in JAX, all compute in ONE pallas_call.
# ---------------------------------------------------------------------------
def ser_forward(input_values, packed, *, batch_tile=None):
    B, T = input_values.shape
    frame = packed["frame"]
    assert T % frame == 0, "T must be a multiple of the frame size (torch reshape would error)"
    S = T // frame
    M = B * S
    Fp, Hp, Hcp, Cp, C = packed["Fp"], packed["Hp"], packed["Hcp"], packed["Cp"], packed["C"]
    n_enc_used = packed["n_enc_used"]
    n_mm = 1 + n_enc_used

    # Batch-tile knob: tiles the resident hidden block over rows (VMEM budget / v7x
    # megacore). Tiles must contain whole batch elements so pooling stays tile-local,
    # and the (batch_tile, Cp) output block must satisfy the (8, 128) / full-dim rule.
    if batch_tile is None:
        batch_tile = B
    assert B % batch_tile == 0
    nb = B // batch_tile
    tm = batch_tile * S                        # hidden-state rows per grid step

    # Frame the waveform, zero-pad the frame dim to Fp (lane-dense), cast bf16.
    frames = input_values.reshape(M, frame)
    x0 = jnp.pad(frames, ((0, 0), (0, Fp - frame))).astype(jnp.bfloat16)

    kernel = functools.partial(_ser_fused_kernel,
                               batch_tile=batch_tile, seq=S, hidden_pad=Hp)

    # VMEM budget: double-buffered input blocks + output + resident scratch (+ headroom).
    vmem_bytes = (
        2 * tm * Fp * 2 + 2 * Fp * Hp * 2 + 2 * Hp * 4
        + 2 * Hp * Hp * 2 + 2 * Hp * 4
        + 2 * Hp * Hcp * 2 + 2 * Hcp * 4 + 2 * Hcp * Cp * 2 + 2 * Cp * 4
        + 2 * batch_tile * Cp * 4
        + tm * Hp * 2
    )
    vmem_limit = min(64 << 20, max(32 << 20, vmem_bytes + (4 << 20)))

    flops = nb * (2 * tm * Fp * Hp + 2 * tm * Hp * Hp * n_enc_used
                  + 2 * batch_tile * (Hp * Hcp + Hcp * Cp))
    transcendentals = M * Hp * n_mm
    bytes_accessed = (x0.size * 2
                      + nb * (packed["w_proj"].size * 2 + packed["b_proj"].size * 4
                              + packed["w_enc"].size * 2 + packed["b_enc"].size * 4
                              + packed["w_c1"].size * 2 + packed["b_c1"].size * 4
                              + packed["w_c2"].size * 2 + packed["b_c2"].size * 4)
                      + B * Cp * 4)

    enc_idx = lambda b, l: (jnp.maximum(l - 1, 0), 0, 0)   # layer l uses enc weight l-1

    logits_p = pl.pallas_call(
        kernel,
        out_shape=jax.ShapeDtypeStruct((B, Cp), jnp.float32),
        grid=(nb, n_mm),
        in_specs=[
            pl.BlockSpec((tm, Fp), lambda b, l: (b, 0)),       # framed input (per batch tile)
            pl.BlockSpec((Fp, Hp), lambda b, l: (0, 0)),       # projection weight
            pl.BlockSpec((1, Hp), lambda b, l: (0, 0)),        # projection bias (f32)
            pl.BlockSpec((1, Hp, Hp), enc_idx),                # per-layer encoder weight
            pl.BlockSpec((1, 1, Hp), enc_idx),                 # per-layer encoder bias (f32)
            pl.BlockSpec((Hp, Hcp), lambda b, l: (0, 0)),      # classifier W1
            pl.BlockSpec((1, Hcp), lambda b, l: (0, 0)),       # classifier b1 (f32)
            pl.BlockSpec((Hcp, Cp), lambda b, l: (0, 0)),      # classifier W2
            pl.BlockSpec((1, Cp), lambda b, l: (0, 0)),        # classifier b2 (f32)
        ],
        out_specs=pl.BlockSpec((batch_tile, Cp), lambda b, l: (b, 0)),
        scratch_shapes=[pltpu.VMEM((tm, Hp), jnp.bfloat16)],   # resident hidden state
        compiler_params=pltpu.CompilerParams(
            dimension_semantics=("parallel", "arbitrary"),
            vmem_limit_bytes=int(vmem_limit)),
        cost_estimate=pl.CostEstimate(
            flops=flops, transcendentals=transcendentals, bytes_accessed=bytes_accessed),
    )(x0, packed["w_proj"], packed["b_proj"], packed["w_enc"], packed["b_enc"],
      packed["w_c1"], packed["b_c1"], packed["w_c2"], packed["b_c2"])

    return logits_p[:, :C]


# ---------------------------------------------------------------------------
# Pure-JAX reference (mirrors the kernel's bf16-matmul / f32-accumulate numerics
# and the f32 mean-over-time reduction).
# ---------------------------------------------------------------------------
def ser_forward_ref(input_values, params, layer_to_extract):
    B, T = input_values.shape
    frame = params["frame"]
    S = T // frame
    frames = input_values.reshape(B * S, frame)

    h = frames.astype(jnp.bfloat16)
    y = jnp.dot(h, params["w_proj"].astype(jnp.bfloat16),
                preferred_element_type=jnp.float32) + params["b_proj"]
    h = jax.nn.gelu(y, approximate=True).astype(jnp.bfloat16)
    for l in range(min(layer_to_extract, len(params["enc_w"]))):
        y = jnp.dot(h, params["enc_w"][l].astype(jnp.bfloat16),
                    preferred_element_type=jnp.float32) + params["enc_b"][l]
        h = jax.nn.gelu(y, approximate=True).astype(jnp.bfloat16)

    H = params["w_proj"].shape[1]
    pooled = h.astype(jnp.float32).reshape(B, S, H).sum(axis=1) * (1.0 / S)
    z = jnp.maximum(jnp.dot(pooled.astype(jnp.bfloat16),
                            params["w_c1"].astype(jnp.bfloat16),
                            preferred_element_type=jnp.float32) + params["b_c1"], 0.0)
    logits = jnp.dot(z.astype(jnp.bfloat16),
                     params["w_c2"].astype(jnp.bfloat16),
                     preferred_element_type=jnp.float32) + params["b_c2"]
    return logits


def init_params(key, frame, H, Hc, C, num_layers):
    keys = jax.random.split(key, 3 + 2 * num_layers)
    scale = 0.1
    return {
        "frame": frame,
        "w_proj": scale * jax.random.normal(keys[0], (frame, H), jnp.float32),
        "b_proj": jnp.zeros((H,), jnp.float32),
        "enc_w": [scale * jax.random.normal(keys[1 + i], (H, H), jnp.float32)
                  for i in range(num_layers)],
        "enc_b": [0.01 * jnp.ones((H,), jnp.float32) for _ in range(num_layers)],
        "w_c1": scale * jax.random.normal(keys[1 + num_layers], (H, Hc), jnp.float32),
        "b_c1": jnp.zeros((Hc,), jnp.float32),
        "w_c2": scale * jax.random.normal(keys[2 + num_layers], (Hc, C), jnp.float32),
        "b_c2": jnp.zeros((C,), jnp.float32),
    }


if __name__ == "__main__":
    key = jax.random.PRNGKey(0)
    k_in, k_p = jax.random.split(key)

    B, T = 2, 128          # batch, raw audio samples
    frame = 16             # samples per frame -> S = 8 time steps, M = B*S = 16
    H, Hc, C = 32, 16, 4   # hidden, classifier hidden, num emotion classes
    num_layers = 3
    layer_to_extract = 2   # matches SERModel.layer_to_extract

    input_values = jax.random.normal(k_in, (B, T), jnp.float32)
    params = init_params(k_p, frame, H, Hc, C, num_layers)
    packed = pack_params(params, layer_to_extract)   # padded / stacked / bf16, done once

    logits = ser_forward(input_values, packed)
    logits = jax.block_until_ready(logits)

    ref = ser_forward_ref(input_values, params, layer_to_extract)
    assert logits.shape == (B, C)
    assert jnp.allclose(logits, ref, atol=2e-3, rtol=2e-3), "mismatch vs reference"

    print("KERNEL_OK")
</pallas_src>

<mosaic_0001>
module attributes {stable_mosaic.version = 11 : i64} {
  func.func @_ser_fused_kernel(%arg0: i32, %arg1: i32, %arg2: memref<16x128xbf16, #tpu.memory_space<vmem>>, %arg3: memref<128x128xbf16, #tpu.memory_space<vmem>>, %arg4: memref<1x128xf32, #tpu.memory_space<vmem>>, %arg5: memref<1x128x128xbf16, #tpu.memory_space<vmem>>, %arg6: memref<1x1x128xf32, #tpu.memory_space<vmem>>, %arg7: memref<128x128xbf16, #tpu.memory_space<vmem>>, %arg8: memref<1x128xf32, #tpu.memory_space<vmem>>, %arg9: memref<128x128xbf16, #tpu.memory_space<vmem>>, %arg10: memref<1x128xf32, #tpu.memory_space<vmem>>, %arg11: memref<2x128xf32, #tpu.memory_space<vmem>>, %arg12: memref<16x128xbf16, #tpu.memory_space<vmem>>) attributes {dimension_semantics = [#tpu.dimension_semantics<parallel>, #tpu.dimension_semantics<arbitrary>], iteration_bounds = array<i64: 1, 3>, scalar_prefetch = 0 : i64, scratch_operands = 1 : i64, tpu.core_type = #tpu.core_type<tc>, window_params = [{transform_indices = @transform_0, window_bounds = array<i64: 16, 128>}, {pipeline_mode = #tpu.pipeline_mode<synchronous>, transform_indices = @transform_1, window_bounds = array<i64: 128, 128>}, {pipeline_mode = #tpu.pipeline_mode<synchronous>, transform_indices = @transform_2, window_bounds = array<i64: 1, 128>}, {transform_indices = @transform_3, window_bounds = array<i64: 1, 128, 128>}, {transform_indices = @transform_4, window_bounds = array<i64: 1, 1, 128>}, {pipeline_mode = #tpu.pipeline_mode<synchronous>, transform_indices = @transform_5, window_bounds = array<i64: 128, 128>}, {pipeline_mode = #tpu.pipeline_mode<synchronous>, transform_indices = @transform_6, window_bounds = array<i64: 1, 128>}, {pipeline_mode = #tpu.pipeline_mode<synchronous>, transform_indices = @transform_7, window_bounds = array<i64: 128, 128>}, {pipeline_mode = #tpu.pipeline_mode<synchronous>, transform_indices = @transform_8, window_bounds = array<i64: 1, 128>}, {transform_indices = @transform_9, window_bounds = array<i64: 2, 128>}]} {
    %c0_i32 = arith.constant 0 : i32
    %0 = arith.cmpi eq, %arg1, %c0_i32 : i32
    %1 = arith.extui %0 : i1 to i32
    %c0_i32_0 = arith.constant 0 : i32
    %2 = arith.cmpi ne, %1, %c0_i32_0 : i32
    scf.if %2 {
      %c0 = arith.constant 0 : index
      %c0_4 = arith.constant 0 : index
      %9 = vector.load %arg2[%c0, %c0_4] : memref<16x128xbf16, #tpu.memory_space<vmem>>, vector<16x128xbf16>
      %c0_5 = arith.constant 0 : index
      %c0_6 = arith.constant 0 : index
      %10 = vector.load %arg3[%c0_5, %c0_6] : memref<128x128xbf16, #tpu.memory_space<vmem>>, vector<128x128xbf16>
      %cst = arith.constant dense<0.000000e+00> : vector<16x128xf32>
      %11 = tpu.matmul %9, %10, %cst {dimension_numbers = #tpu.dot_dimension_numbers<[1], [0], [0], [1], [0, 0, 1, 1], [], []>} : vector<16x128xbf16>, vector<128x128xbf16>, vector<16x128xf32> -> vector<16x128xf32>
      %c0_7 = arith.constant 0 : index
      %c0_8 = arith.constant 0 : index
      %12 = vector.load %arg4[%c0_7, %c0_8] : memref<1x128xf32, #tpu.memory_space<vmem>>, vector<1x128xf32>
      %13 = vector.broadcast %12 : vector<1x128xf32> to vector<16x128xf32>
      %14 = arith.addf %11, %13 : vector<16x128xf32>
      %15 = arith.mulf %14, %14 : vector<16x128xf32>
      %16 = arith.mulf %14, %15 : vector<16x128xf32>
      %cst_9 = arith.constant 4.471500e-02 : f32
      %17 = vector.broadcast %cst_9 : f32 to vector<16x128xf32>
      %18 = arith.mulf %17, %16 : vector<16x128xf32>
      %19 = arith.addf %14, %18 : vector<16x128xf32>
      %cst_10 = arith.constant 0.797884583 : f32
      %20 = vector.broadcast %cst_10 : f32 to vector<16x128xf32>
      %21 = arith.mulf %20, %19 : vector<16x128xf32>
      %22 = math.tanh %21 : vector<16x128xf32>
      %cst_11 = arith.constant 1.000000e+00 : f32
      %23 = vector.broadcast %cst_11 : f32 to vector<16x128xf32>
      %24 = arith.addf %23, %22 : vector<16x128xf32>
      %cst_12 = arith.constant 5.000000e-01 : f32
      %25 = vector.broadcast %cst_12 : f32 to vector<16x128xf32>
      %26 = arith.mulf %25, %24 : vector<16x128xf32>
      %27 = arith.mulf %14, %26 : vector<16x128xf32>
      %28 = arith.truncf %27 : vector<16x128xf32> to vector<16x128xbf16>
      %c0_13 = arith.constant 0 : index
      %c0_14 = arith.constant 0 : index
      %29 = vector.load %arg12[%c0_13, %c0_14] : memref<16x128xbf16, #tpu.memory_space<vmem>>, vector<16x128xbf16>
      tpu.vector_store %arg12[%c0_13, %c0_14], %28 {strides = array<i32>} : memref<16x128xbf16, #tpu.memory_space<vmem>>, vector<16x128xbf16>,
    } else {
    }
    %c0_i32_1 = arith.constant 0 : i32
    %3 = arith.cmpi sgt, %arg1, %c0_i32_1 : i32
    %4 = arith.extui %3 : i1 to i32
    %c0_i32_2 = arith.constant 0 : i32
    %5 = arith.cmpi ne, %4, %c0_i32_2 : i32
    scf.if %5 {
      %c0 = arith.constant 0 : index
      %c0_4 = arith.constant 0 : index
      %9 = vector.load %arg12[%c0, %c0_4] : memref<16x128xbf16, #tpu.memory_space<vmem>>, vector<16x128xbf16>
      %c0_5 = arith.constant 0 : index
      %c0_6 = arith.constant 0 : index
      %c0_7 = arith.constant 0 : index
      %10 = vector.load %arg5[%c0_5, %c0_6, %c0_7] : memref<1x128x128xbf16, #tpu.memory_space<vmem>>, vector<1x128x128xbf16>
      %11 = vector.shape_cast %10 : vector<1x128x128xbf16> to vector<128x128xbf16>
      %cst = arith.constant dense<0.000000e+00> : vector<16x128xf32>
      %12 = tpu.matmul %9, %11, %cst {dimension_numbers = #tpu.dot_dimension_numbers<[1], [0], [0], [1], [0, 0, 1, 1], [], []>} : vector<16x128xbf16>, vector<128x128xbf16>, vector<16x128xf32> -> vector<16x128xf32>
      %c0_8 = arith.constant 0 : index
      %c0_9 = arith.constant 0 : index
      %c0_10 = arith.constant 0 : index
      %13 = vector.load %arg6[%c0_8, %c0_9, %c0_10] : memref<1x1x128xf32, #tpu.memory_space<vmem>>, vector<1x1x128xf32>
      %14 = vector.shape_cast %13 : vector<1x1x128xf32> to vector<1x128xf32>
      %15 = vector.broadcast %14 : vector<1x128xf32> to vector<16x128xf32>
      %16 = arith.addf %12, %15 : vector<16x128xf32>
      %17 = arith.mulf %16, %16 : vector<16x128xf32>
      %18 = arith.mulf %16, %17 : vector<16x128xf32>
      %cst_11 = arith.constant 4.471500e-02 : f32
      %19 = vector.broadcast %cst_11 : f32 to vector<16x128xf32>
      %20 = arith.mulf %19, %18 : vector<16x128xf32>
      %21 = arith.addf %16, %20 : vector<16x128xf32>
      %cst_12 = arith.constant 0.797884583 : f32
      %22 = vector.broadcast %cst_12 : f32 to vector<16x128xf32>
      %23 = arith.mulf %22, %21 : vector<16x128xf32>
      %24 = math.tanh %23 : vector<16x128xf32>
      %cst_13 = arith.constant 1.000000e+00 : f32
      %25 = vector.broadcast %cst_13 : f32 to vector<16x128xf32>
      %26 = arith.addf %25, %24 : vector<16x128xf32>
      %cst_14 = arith.constant 5.000000e-01 : f32
      %27 = vector.broadcast %cst_14 : f32 to vector<16x128xf32>
      %28 = arith.mulf %27, %26 : vector<16x128xf32>
      %29 = arith.mulf %16, %28 : vector<16x128xf32>
      %30 = arith.truncf %29 : vector<16x128xf32> to vector<16x128xbf16>
      %c0_15 = arith.constant 0 : index
      %c0_16 = arith.constant 0 : index
      %31 = vector.load %arg12[%c0_15, %c0_16] : memref<16x128xbf16, #tpu.memory_space<vmem>>, vector<16x128xbf16>
      tpu.vector_store %arg12[%c0_15, %c0_16], %30 {strides = array<i32>} : memref<16x128xbf16, #tpu.memory_space<vmem>>, vector<16x128xbf16>,
    } else {
    }
    %c2_i32 = arith.constant 2 : i32
    %6 = arith.cmpi eq, %arg1, %c2_i32 : i32
    %7 = arith.extui %6 : i1 to i32
    %c0_i32_3 = arith.constant 0 : i32
    %8 = arith.cmpi ne, %7, %c0_i32_3 : i32
    scf.if %8 {
      %c0 = arith.constant 0 : index
      %c0_4 = arith.constant 0 : index
      %9 = vector.load %arg12[%c0, %c0_4] : memref<16x128xbf16, #tpu.memory_space<vmem>>, vector<16x128xbf16>
      %10 = arith.extf %9 : vector<16x128xbf16> to vector<16x128xf32>
      %11 = vector.shape_cast %10 : vector<16x128xf32> to vector<2x8x128xf32>
      %cst = arith.constant dense<0.000000e+00> : vector<2x128xf32>
      %12 = vector.multi_reduction <add>, %11, %cst [1] : vector<2x8x128xf32> to vector<2x128xf32>
      %cst_5 = arith.constant 1.250000e-01 : f32
      %13 = vector.broadcast %cst_5 : f32 to vector<2x128xf32>
      %14 = arith.mulf %12, %13 : vector<2x128xf32>
      %15 = arith.truncf %14 : vector<2x128xf32> to vector<2x128xbf16>
      %c0_6 = arith.constant 0 : index
      %c0_7 = arith.constant 0 : index
      %16 = vector.load %arg7[%c0_6, %c0_7] : memref<128x128xbf16, #tpu.memory_space<vmem>>, vector<128x128xbf16>
      %cst_8 = arith.constant dense<0.000000e+00> : vector<2x128xf32>
      %17 = tpu.matmul %15, %16, %cst_8 {dimension_numbers = #tpu.dot_dimension_numbers<[1], [0], [0], [1], [0, 0, 1, 1], [], []>} : vector<2x128xbf16>, vector<128x128xbf16>, vector<2x128xf32> -> vector<2x128xf32>
      %c0_9 = arith.constant 0 : index
      %c0_10 = arith.constant 0 : index
      %18 = vector.load %arg8[%c0_9, %c0_10] : memref<1x128xf32, #tpu.memory_space<vmem>>, vector<1x128xf32>
      %19 = vector.broadcast %18 : vector<1x128xf32> to vector<2x128xf32>
      %20 = arith.addf %17, %19 : vector<2x128xf32>
      %cst_11 = arith.constant 0.000000e+00 : f32
      %21 = vector.broadcast %cst_11 : f32 to vector<2x128xf32>
      %22 = arith.maximumf %20, %21 : vector<2x128xf32>
      %23 = arith.truncf %22 : vector<2x128xf32> to vector<2x128xbf16>
      %c0_12 = arith.constant 0 : index
      %c0_13 = arith.constant 0 : index
      %24 = vector.load %arg9[%c0_12, %c0_13] : memref<128x128xbf16, #tpu.memory_space<vmem>>, vector<128x128xbf16>
      %cst_14 = arith.constant dense<0.000000e+00> : vector<2x128xf32>
      %25 = tpu.matmul %23, %24, %cst_14 {dimension_numbers = #tpu.dot_dimension_numbers<[1], [0], [0], [1], [0, 0, 1, 1], [], []>} : vector<2x128xbf16>, vector<128x128xbf16>, vector<2x128xf32> -> vector<2x128xf32>
      %c0_15 = arith.constant 0 : index
      %c0_16 = arith.constant 0 : index
      %26 = vector.load %arg10[%c0_15, %c0_16] : memref<1x128xf32, #tpu.memory_space<vmem>>, vector<1x128xf32>
      %27 = vector.broadcast %26 : vector<1x128xf32> to vector<2x128xf32>
      %28 = arith.addf %25, %27 : vector<2x128xf32>
      %c0_17 = arith.constant 0 : index
      %c0_18 = arith.constant 0 : index
      %29 = vector.load %arg11[%c0_17, %c0_18] : memref<2x128xf32, #tpu.memory_space<vmem>>, vector<2x128xf32>
      tpu.vector_store %arg11[%c0_17, %c0_18], %28 {strides = array<i32>} : memref<2x128xf32, #tpu.memory_space<vmem>>, vector<2x128xf32>,
    } else {
    }
    return
  }
  func.func @transform_0(%arg0: i32, %arg1: i32) -> (i32, i32) {
    %c0_i32 = arith.constant 0 : i32
    %c0_i32_0 = arith.constant 0 : i32
    return %arg0, %c0_i32 : i32, i32
  }
  func.func @transform_1(%arg0: i32, %arg1: i32) -> (i32, i32) {
    %c0_i32 = arith.constant 0 : i32
    %c0_i32_0 = arith.constant 0 : i32
    %c0_i32_1 = arith.constant 0 : i32
    return %c0_i32, %c0_i32_0 : i32, i32
  }
  func.func @transform_2(%arg0: i32, %arg1: i32) -> (i32, i32) {
    %c0_i32 = arith.constant 0 : i32
    %c0_i32_0 = arith.constant 0 : i32
    %c0_i32_1 = arith.constant 0 : i32
    return %c0_i32, %c0_i32_0 : i32, i32
  }
  func.func @transform_3(%arg0: i32, %arg1: i32) -> (i32, i32, i32) {
    %c1_i32 = arith.constant 1 : i32
    %0 = arith.subi %arg1, %c1_i32 : i32
    %c0_i32 = arith.constant 0 : i32
    %1 = arith.maxsi %0, %c0_i32 : i32
    %c0_i32_0 = arith.constant 0 : i32
    %c0_i32_1 = arith.constant 0 : i32
    %c0_i32_2 = arith.constant 0 : i32
    return %1, %c0_i32_0, %c0_i32_1 : i32, i32, i32
  }
  func.func @transform_4(%arg0: i32, %arg1: i32) -> (i32, i32, i32) {
    %c1_i32 = arith.constant 1 : i32
    %0 = arith.subi %arg1, %c1_i32 : i32
    %c0_i32 = arith.constant 0 : i32
    %1 = arith.maxsi %0, %c0_i32 : i32
    %c0_i32_0 = arith.constant 0 : i32
    %c0_i32_1 = arith.constant 0 : i32
    %c0_i32_2 = arith.constant 0 : i32
    return %1, %c0_i32_0, %c0_i32_1 : i32, i32, i32
  }
  func.func @transform_5(%arg0: i32, %arg1: i32) -> (i32, i32) {
    %c0_i32 = arith.constant 0 : i32
    %c0_i32_0 = arith.constant 0 : i32
    %c0_i32_1 = arith.constant 0 : i32
    return %c0_i32, %c0_i32_0 : i32, i32
  }
  func.func @transform_6(%arg0: i32, %arg1: i32) -> (i32, i32) {
    %c0_i32 = arith.constant 0 : i32
    %c0_i32_0 = arith.constant 0 : i32
    %c0_i32_1 = arith.constant 0 : i32
    return %c0_i32, %c0_i32_0 : i32, i32
  }
  func.func @transform_7(%arg0: i32, %arg1: i32) -> (i32, i32) {
    %c0_i32 = arith.constant 0 : i32
    %c0_i32_0 = arith.constant 0 : i32
    %c0_i32_1 = arith.constant 0 : i32
    return %c0_i32, %c0_i32_0 : i32, i32
  }
  func.func @transform_8(%arg0: i32, %arg1: i32) -> (i32, i32) {
    %c0_i32 = arith.constant 0 : i32
    %c0_i32_0 = arith.constant 0 : i32
    %c0_i32_1 = arith.constant 0 : i32
    return %c0_i32, %c0_i32_0 : i32, i32
  }
  func.func @transform_9(%arg0: i32, %arg1: i32) -> (i32, i32) {
    %c0_i32 = arith.constant 0 : i32
    %c0_i32_0 = arith.constant 0 : i32
    return %arg0, %c0_i32 : i32, i32
  }
}

</mosaic_0001>

<llo_original>
// kernel: tpu_custom_call.1
$region0: #{tpu_custom_call.1}
  #allocation0 [shape = 'u32[]', space=smem, size = 0x4, offset = 0x4, fixed_abs, tag = 'smem constant byte address 0x4 - core index']
  #allocation1 [shape = 'u32[72,128]{1,0:T(1,128)}', space=vmem, size = 0x9000, scoped, tag = 'internal scratch']
  #allocation2 [shape = 'bf16[16,128]{1,0:T(8,128)(2,1)}', space=vmem, size = 0x1000, scoped, tag = 'scratch operand']
  %s0 = inlined_call_operand.hbm [shape: bf16[16,128], index: 0, kind: input, shape index: {}]
  %s1 = inlined_call_operand.hbm [shape: bf16[128,128], index: 1, kind: input, shape index: {}]
  %s2 = inlined_call_operand.vmem [shape: f32[1,128], index: 2, kind: input, shape index: {}]
  %s3 = inlined_call_operand.hbm [shape: bf16[2,128,128], index: 3, kind: input, shape index: {}]
  %s4 = inlined_call_operand.vmem [shape: f32[2,1,128], index: 4, kind: input, shape index: {}]
  %s5 = inlined_call_operand.hbm [shape: bf16[128,128], index: 5, kind: input, shape index: {}]
  %s6 = inlined_call_operand.vmem [shape: f32[1,128], index: 6, kind: input, shape index: {}]
  %s7 = inlined_call_operand.hbm [shape: bf16[128,128], index: 7, kind: input, shape index: {}]
  %s8 = inlined_call_operand.vmem [shape: f32[1,128], index: 8, kind: input, shape index: {}]
  %s9 = inlined_call_operand.hbm [shape: f32[2,128], index: 9, kind: output, shape index: {}]
  %s10 = sld [smem:[#allocation0]]
  $region101: #{tpu_custom_call.1} parent=0
    _
  %s12 = ssub.s32 1, %s10
  %s13 = scalar_select 0, %s12, %s10
  $region1: #{tpu_custom_call.1} parent=0
    #allocation3 [shape = 'u8[4096]{0}', space=vmem, size = 0x1000, scoped, tag = 'input window, operand 0, single buffered']
    #allocation4 [shape = 's32[2]{0}', space=sflag, size = 0x8, scoped, tag = 'scoped memory for tpu_custom_call.1']
    #allocation5 [shape = 's32[2]{0}', space=sflag, size = 0x8, scoped, tag = 'scoped memory for tpu_custom_call.1']
    #allocation6 [shape = 'u8[32768]{0}', space=vmem, size = 0x8000, scoped, tag = 'input window, operand 1, single buffered']
    #allocation7 [shape = 's32[1]{0}', space=sflag, size = 0x4, scoped, tag = 'scoped memory for tpu_custom_call.1']
    #allocation8 [shape = 'u8[65536]{0}', space=vmem, size = 0x10000, scoped, tag = 'input window, operand 3']
    #allocation9 [shape = 'u8[32768]{0}', space=vmem, size = 0x8000, scoped, tag = 'input window, operand 5, single buffered']
    #allocation10 [shape = 'u8[32768]{0}', space=vmem, size = 0x8000, scoped, tag = 'input window, operand 7, single buffered']
    #allocation11 [shape = 's32[1]{0}', space=sflag, size = 0x4, scoped, tag = 'scoped memory for tpu_custom_call.1']
    #allocation12 [shape = 'u8[1024]{0}', space=vmem, size = 0x400, scoped, tag = 'output window, operand 0, single buffered']
    %14 = vsyncpa [#allocation4], 0
    %15 = vsyncpa [#allocation7], 0
    %16 = vsyncpa [#allocation11], 0
    %17 = vsyncpa [#allocation5], 0
    loop: start=0, step=1, limit=5
    $region2: #{tpu_custom_call.1} parent=1 // loop_pre_header
      _
    $region3: #{tpu_custom_call.1} parent=1 // loop_header
      %s19 = sphi 0, %s23
      %p20 = scmp.ge.s32.totalorder %s19, 5
      %s26 = sphi 0, %s38
      %s27 = sphi 0, %s34
      %s28 = sphi 0, %s26
      %s29 = sphi 0, %s27
      %s30 = sphi 0, %s28
      %s31 = sphi 0, %s29
      %s41 = sphi 0, %s43
      %s44 = sphi 0, %s41
      %s45 = sphi 0, %s44
      %s61 = sphi 0, %s45
      %s65 = sphi 0, %s65
      %s67 = sphi 0, %s65
      %s68 = sphi 0, %s67
      %s82 = sphi 0, %s68
      %s86 = sphi 0, %s86
      %s88 = sphi 0, %s86
      %s89 = sphi 0, %s88
      %s103 = sphi 0, %s89
      %s115 = sphi 0, %s117
      %s118 = sphi 0, %s115
      %s119 = sphi 0, %s118
      %s135 = sphi 0, %s119
      %s147 = sphi 0, %s149
      %s150 = sphi 0, %s147
      %s151 = sphi 0, %s150
      %s167 = sphi 0, %s151
      %s171 = sphi 0, %s171
      %s173 = sphi 0, %s171
      %s174 = sphi 0, %s173
      %s188 = sphi 0, %s174
      %s192 = sphi 0, %s192
      %s194 = sphi 0, %s192
      %s195 = sphi 0, %s194
      %s209 = sphi 0, %s195
      %s213 = sphi 0, %s213
      %s215 = sphi 0, %s213
      %s216 = sphi 0, %s215
      %s230 = sphi 0, %s216
      %s234 = sphi 0, %s234
      %s236 = sphi 0, %s234
      %s237 = sphi 0, %s236
      %s251 = sphi 0, %s237
      %s257 = sphi 0, %s259
      %s260 = sphi 0, %s257
      %s261 = sphi 0, %s260
      %s277 = sphi 0, %s261
    $region4: #{tpu_custom_call.1} parent=1 // loop_header_branch
      %22 = sbr.rel (%p20) target = $region8
    $region5: #{tpu_custom_call.1} parent=1 // loop_body
      %s24 = ssub.s32 %s19, 1
      %s25 = ssub.s32 %s19, 2
      %s32 = sadd.s32 1, %s27
      %p33 = scmp.ge.s32.totalorder %s32, 3
      %s34 = scalar_select %p33, 0, %s32
      %s35 = sadd.s32 1, %s26
      %s36 = scalar_select %p33, %s35, %s26
      %p37 = scmp.ge.s32.totalorder %s36, 1
      %s38 = scalar_select %p37, 0, %s36
      %s39 = ssub.s32 %s26, %s38
      %p40 = scmp.eq.s32.totalorder %s39, 0
      %s42 = sadd.s32 %s41, 1
      %s43 = scalar_select %p40, %s41, %s42
      %p46 = pneg %p40
      %p47 = scmp.eq.s32.totalorder %s19, 2
      %p48 = por %p46, %p47
      %p49 = scmp.ne.s32.totalorder %s41, %s44
      %p50 = scmp.eq.s32.totalorder %s19, 0
      %p51 = por %p49, %p50
      %p52 = scmp.ne.s32.totalorder %s41, %s44
      %p53 = scmp.eq.s32.totalorder %s24, 2
      %p54 = por %p52, %p53
      %p55 = scmp.ne.s32.totalorder %s44, %s45
      %p56 = scmp.eq.s32.totalorder %s24, 0
      %p57 = por %p55, %p56
      %p58 = scmp.ne.s32.totalorder %s44, %s45
      %p59 = scmp.eq.s32.totalorder %s25, 2
      %p60 = por %p58, %p59
      %p62 = scmp.ne.s32.totalorder %s45, %s61
      %p63 = scmp.eq.s32.totalorder %s25, 0
      %p64 = por %p62, %p63
      %s66 = sadd.s32 %s65, 1
      %p69 = scmp.eq.s32.totalorder %s19, 2
      %p70 = scmp.ne.s32.totalorder %s65, %s67
      %p71 = scmp.eq.s32.totalorder %s19, 0
      %p72 = por %p70, %p71
      %p73 = scmp.ne.s32.totalorder %s65, %s67
      %p74 = scmp.eq.s32.totalorder %s24, 2
      %p75 = por %p73, %p74
      %p76 = scmp.ne.s32.totalorder %s67, %s68
      %p77 = scmp.eq.s32.totalorder %s24, 0
      %p78 = por %p76, %p77
      %p79 = scmp.ne.s32.totalorder %s67, %s68
      %p80 = scmp.eq.s32.totalorder %s25, 2
      %p81 = por %p79, %p80
      %p83 = scmp.ne.s32.totalorder %s68, %s82
      %p84 = scmp.eq.s32.totalorder %s25, 0
      %p85 = por %p83, %p84
      %s87 = sadd.s32 %s86, 1
      %p90 = scmp.eq.s32.totalorder %s19, 2
      %p91 = scmp.ne.s32.totalorder %s86, %s88
      %p92 = scmp.eq.s32.totalorder %s19, 0
      %p93 = por %p91, %p92
      %p94 = scmp.ne.s32.totalorder %s86, %s88
      %p95 = scmp.eq.s32.totalorder %s24, 2
      %p96 = por %p94, %p95
      %p97 = scmp.ne.s32.totalorder %s88, %s89
      %p98 = scmp.eq.s32.totalorder %s24, 0
      %p99 = por %p97, %p98
      %p100 = scmp.ne.s32.totalorder %s88, %s89
      %p101 = scmp.eq.s32.totalorder %s25, 2
      %p102 = por %p100, %p101
      %p104 = scmp.ne.s32.totalorder %s89, %s103
      %p105 = scmp.eq.s32.totalorder %s25, 0
      %p106 = por %p104, %p105
      %s107 = ssub.s32 %s27, 1
      %p108 = scmp.gt.s32.totalorder %s107, 0
      %s109 = scalar_select %p108, %s107, 0
      %s110 = ssub.s32 %s34, 1
      %p111 = scmp.gt.s32.totalorder %s110, 0
      %s112 = scalar_select %p111, %s110, 0
      %s113 = ssub.s32 %s109, %s112
      %p114 = scmp.eq.s32.totalorder %s113, 0
      %s116 = sadd.s32 %s115, 1
      %s117 = scalar_select %p114, %s115, %s116
      %p120 = pneg %p114
      %p121 = scmp.eq.s32.totalorder %s19, 2
      %p122 = por %p120, %p121
      %p123 = scmp.ne.s32.totalorder %s115, %s118
      %p124 = scmp.eq.s32.totalorder %s19, 0
      %p125 = por %p123, %p124
      %p126 = scmp.ne.s32.totalorder %s115, %s118
      %p127 = scmp.eq.s32.totalorder %s24, 2
      %p128 = por %p126, %p127
      %p129 = scmp.ne.s32.totalorder %s118, %s119
      %p130 = scmp.eq.s32.totalorder %s24, 0
      %p131 = por %p129, %p130
      %p132 = scmp.ne.s32.totalorder %s118, %s119
      %p133 = scmp.eq.s32.totalorder %s25, 2
      %p134 = por %p132, %p133
      %p136 = scmp.ne.s32.totalorder %s119, %s135
      %p137 = scmp.eq.s32.totalorder %s25, 0
      %p138 = por %p136, %p137
      %s139 = ssub.s32 %s27, 1
      %p140 = scmp.gt.s32.totalorder %s139, 0
      %s141 = scalar_select %p140, %s139, 0
      %s142 = ssub.s32 %s34, 1
      %p143 = scmp.gt.s32.totalorder %s142, 0
      %s144 = scalar_select %p143, %s142, 0
      %s145 = ssub.s32 %s141, %s144
      %p146 = scmp.eq.s32.totalorder %s145, 0
      %s148 = sadd.s32 %s147, 1
      %s149 = scalar_select %p146, %s147, %s148
      %p152 = pneg %p146
      %p153 = scmp.eq.s32.totalorder %s19, 2
      %p154 = por %p152, %p153
      %p155 = scmp.ne.s32.totalorder %s147, %s150
      %p156 = scmp.eq.s32.totalorder %s19, 0
      %p157 = por %p155, %p156
      %p158 = scmp.ne.s32.totalorder %s147, %s150
      %p159 = scmp.eq.s32.totalorder %s24, 2
      %p160 = por %p158, %p159
      %p161 = scmp.ne.s32.totalorder %s150, %s151
      %p162 = scmp.eq.s32.totalorder %s24, 0
      %p163 = por %p161, %p162
      %p164 = scmp.ne.s32.totalorder %s150, %s151
      %p165 = scmp.eq.s32.totalorder %s25, 2
      %p166 = por %p164, %p165
      %p168 = scmp.ne.s32.totalorder %s151, %s167
      %p169 = scmp.eq.s32.totalorder %s25, 0
      %p170 = por %p168, %p169
      %s172 = sadd.s32 %s171, 1
      %p175 = scmp.eq.s32.totalorder %s19, 2
      %p176 = scmp.ne.s32.totalorder %s171, %s173
      %p177 = scmp.eq.s32.totalorder %s19, 0
      %p178 = por %p176, %p177
      %p179 = scmp.ne.s32.totalorder %s171, %s173
      %p180 = scmp.eq.s32.totalorder %s24, 2
      %p181 = por %p179, %p180
      %p182 = scmp.ne.s32.totalorder %s173, %s174
      %p183 = scmp.eq.s32.totalorder %s24, 0
      %p184 = por %p182, %p183
      %p185 = scmp.ne.s32.totalorder %s173, %s174
      %p186 = scmp.eq.s32.totalorder %s25, 2
      %p187 = por %p185, %p186
      %p189 = scmp.ne.s32.totalorder %s174, %s188
      %p190 = scmp.eq.s32.totalorder %s25, 0
      %p191 = por %p189, %p190
      %s193 = sadd.s32 %s192, 1
      %p196 = scmp.eq.s32.totalorder %s19, 2
      %p197 = scmp.ne.s32.totalorder %s192, %s194
      %p198 = scmp.eq.s32.totalorder %s19, 0
      %p199 = por %p197, %p198
      %p200 = scmp.ne.s32.totalorder %s192, %s194
      %p201 = scmp.eq.s32.totalorder %s24, 2
      %p202 = por %p200, %p201
      %p203 = scmp.ne.s32.totalorder %s194, %s195
      %p204 = scmp.eq.s32.totalorder %s24, 0
      %p205 = por %p203, %p204
      %p206 = scmp.ne.s32.totalorder %s194, %s195
      %p207 = scmp.eq.s32.totalorder %s25, 2
      %p208 = por %p206, %p207
      %p210 = scmp.ne.s32.totalorder %s195, %s209
      %p211 = scmp.eq.s32.totalorder %s25, 0
      %p212 = por %p210, %p211
      %s214 = sadd.s32 %s213, 1
      %p217 = scmp.eq.s32.totalorder %s19, 2
      %p218 = scmp.ne.s32.totalorder %s213, %s215
      %p219 = scmp.eq.s32.totalorder %s19, 0
      %p220 = por %p218, %p219
      %p221 = scmp.ne.s32.totalorder %s213, %s215
      %p222 = scmp.eq.s32.totalorder %s24, 2
      %p223 = por %p221, %p222
      %p224 = scmp.ne.s32.totalorder %s215, %s216
      %p225 = scmp.eq.s32.totalorder %s24, 0
      %p226 = por %p224, %p225
      %p227 = scmp.ne.s32.totalorder %s215, %s216
      %p228 = scmp.eq.s32.totalorder %s25, 2
      %p229 = por %p227, %p228
      %p231 = scmp.ne.s32.totalorder %s216, %s230
      %p232 = scmp.eq.s32.totalorder %s25, 0
      %p233 = por %p231, %p232
      %s235 = sadd.s32 %s234, 1
      %p238 = scmp.eq.s32.totalorder %s19, 2
      %p239 = scmp.ne.s32.totalorder %s234, %s236
      %p240 = scmp.eq.s32.totalorder %s19, 0
      %p241 = por %p239, %p240
      %p242 = scmp.ne.s32.totalorder %s234, %s236
      %p243 = scmp.eq.s32.totalorder %s24, 2
      %p244 = por %p242, %p243
      %p245 = scmp.ne.s32.totalorder %s236, %s237
      %p246 = scmp.eq.s32.totalorder %s24, 0
      %p247 = por %p245, %p246
      %p248 = scmp.ne.s32.totalorder %s236, %s237
      %p249 = scmp.eq.s32.totalorder %s25, 2
      %p250 = por %p248, %p249
      %p252 = scmp.ne.s32.totalorder %s237, %s251
      %p253 = scmp.eq.s32.totalorder %s25, 0
      %p254 = por %p252, %p253
      %s255 = ssub.s32 %s26, %s38
      %p256 = scmp.eq.s32.totalorder %s255, 0
      %s258 = sadd.s32 %s257, 1
      %s259 = scalar_select %p256, %s257, %s258
      %p262 = pneg %p256
      %p263 = scmp.eq.s32.totalorder %s19, 2
      %p264 = por %p262, %p263
      %p265 = scmp.ne.s32.totalorder %s257, %s260
      %p266 = scmp.eq.s32.totalorder %s19, 0
      %p267 = por %p265, %p266
      %p268 = scmp.ne.s32.totalorder %s257, %s260
      %p269 = scmp.eq.s32.totalorder %s24, 2
      %p270 = por %p268, %p269
      %p271 = scmp.ne.s32.totalorder %s260, %s261
      %p272 = scmp.eq.s32.totalorder %s24, 0
      %p273 = por %p271, %p272
      %p274 = scmp.ne.s32.totalorder %s260, %s261
      %p275 = scmp.eq.s32.totalorder %s25, 2
      %p276 = por %p274, %p275
      %p278 = scmp.ne.s32.totalorder %s261, %s277
      %p279 = scmp.eq.s32.totalorder %s25, 0
      %p280 = por %p278, %p279
      %p281 = scmp.le.s32.totalorder 1, %s19
      %p282 = scmp.lt.s32.totalorder %s19, 4
      %p283 = pnand %p281, %p282
      %p284 = pneg %p283
      // Predicated region
      $region9: #{tpu_custom_call.1} parent=5 // pred_check
        _
      $region10: #{tpu_custom_call.1} parent=5 // pred_check_branch
        %286 = sbr.rel (%p283) target = $region12
      $region11: #{tpu_custom_call.1} parent=5 // pred_region
        %s287 = ssub.s32 %s19, 1
        // Predicated region
        $region13: #{tpu_custom_call.1} parent=11 // pred_check
          %p288 = pneg %p57
        $region14: #{tpu_custom_call.1} parent=11 // pred_check_branch
          %290 = sbr.rel (%p288) target = $region16
        $region15: #{tpu_custom_call.1} parent=11 // pred_region
          %s291 = smul.u32 2, %s28
          %293 = vsyncadd [#allocation4], 0
          %s294 = smul.addr %s291, 4
          %s295 = scalar_lea.hbm %s0, %s294
          %s296 = sshll.u32 %s295, 4
          %s297 = int_to_ptr.hbm [resolvable:$true] %s296
          %s298 = sshll.u32 [#allocation3], 4
          %s299 = int_to_ptr.vmem [resolvable:$true] %s298
          %304 = dma.hbm_to_vmem [thread:$0]  %s297, 128, %s299, [#allocation4], 64, 64, 4
        $region16: #{tpu_custom_call.1} parent=11 // pred_fallthru
          _
        // Predicated region
        $region17: #{tpu_custom_call.1} parent=11 // pred_check
          %p305 = pneg %p78
        $region18: #{tpu_custom_call.1} parent=11 // pred_check_branch
          %307 = sbr.rel (%p305) target = $region20
        $region19: #{tpu_custom_call.1} parent=11 // pred_region
          %309 = vsyncadd [#allocation7], 0
          %s310 = sshll.u32 %s1, 4
          %s311 = int_to_ptr.hbm [resolvable:$true] %s310
          %s312 = sshll.u32 [#allocation6], 4
          %s313 = int_to_ptr.vmem [resolvable:$true] %s312
          %318 = dma.hbm_to_vmem [thread:$0]  %s311, 1024, %s313, [#allocation7], 64, 64, 4
        $region20: #{tpu_custom_call.1} parent=11 // pred_fallthru
          _
        // Predicated region
        $region21: #{tpu_custom_call.1} parent=11 // pred_check
          %p319 = pneg %p99
        $region22: #{tpu_custom_call.1} parent=11 // pred_check_branch
          %321 = sbr.rel (%p319) target = $region24
        $region23: #{tpu_custom_call.1} parent=11 // pred_region
          _
        $region24: #{tpu_custom_call.1} parent=11 // pred_fallthru
          _
        // Predicated region
        $region25: #{tpu_custom_call.1} parent=11 // pred_check
          %p322 = pneg %p184
        $region26: #{tpu_custom_call.1} parent=11 // pred_check_branch
          %324 = sbr.rel (%p322) target = $region28
        $region27: #{tpu_custom_call.1} parent=11 // pred_region
          %326 = vsyncadd [#allocation7], 0
          %s327 = sshll.u32 %s5, 4
          %s328 = int_to_ptr.hbm [resolvable:$true] %s327
          %s329 = sshll.u32 [#allocation9], 4
          %s330 = int_to_ptr.vmem [resolvable:$true] %s329
          %335 = dma.hbm_to_vmem [thread:$0]  %s328, 1024, %s330, [#allocation7], 64, 64, 4
        $region28: #{tpu_custom_call.1} parent=11 // pred_fallthru
          _
        // Predicated region
        $region29: #{tpu_custom_call.1} parent=11 // pred_check
          %p336 = pneg %p205
        $region30: #{tpu_custom_call.1} parent=11 // pred_check_branch
          %338 = sbr.rel (%p336) target = $region32
        $region31: #{tpu_custom_call.1} parent=11 // pred_region
          _
        $region32: #{tpu_custom_call.1} parent=11 // pred_fallthru
          _
        // Predicated region
        $region33: #{tpu_custom_call.1} parent=11 // pred_check
          %p339 = pneg %p226
        $region34: #{tpu_custom_call.1} parent=11 // pred_check_branch
          %341 = sbr.rel (%p339) target = $region36
        $region35: #{tpu_custom_call.1} parent=11 // pred_region
          %343 = vsyncadd [#allocation11], 0
          %s344 = sshll.u32 %s7, 4
          %s345 = int_to_ptr.hbm [resolvable:$true] %s344
          %s346 = sshll.u32 [#allocation10], 4
          %s347 = int_to_ptr.vmem [resolvable:$true] %s346
          %352 = dma.hbm_to_vmem [thread:$0]  %s345, 1024, %s347, [#allocation11], 64, 64, 4
        $region36: #{tpu_custom_call.1} parent=11 // pred_fallthru
          _
        // Predicated region
        $region37: #{tpu_custom_call.1} parent=11 // pred_check
          %p353 = pneg %p247
        $region38: #{tpu_custom_call.1} parent=11 // pred_check_branch
          %355 = sbr.rel (%p353) target = $region40
        $region39: #{tpu_custom_call.1} parent=11 // pred_region
          _
        $region40: #{tpu_custom_call.1} parent=11 // pred_fallthru
          _
      $region12: #{tpu_custom_call.1} parent=5 // pred_fallthru
        _
      %p356 = scmp.lt.s32.totalorder %s19, 3
      // Predicated region
      $region41: #{tpu_custom_call.1} parent=5 // pred_check
        %p357 = pneg %p356
      $region42: #{tpu_custom_call.1} parent=5 // pred_check_branch
        %359 = sbr.rel (%p357) target = $region44
      $region43: #{tpu_custom_call.1} parent=5 // pred_region
        // Predicated region
        $region45: #{tpu_custom_call.1} parent=43 // pred_check
          %p360 = pneg %p125
        $region46: #{tpu_custom_call.1} parent=43 // pred_check_branch
          %362 = sbr.rel (%p360) target = $region48
        $region47: #{tpu_custom_call.1} parent=43 // pred_region
          %s363 = sand.u32 %s19, 1
          %s364 = scalar_lea.sflag [#allocation4], %s363
          %s365 = sand.u32 %s115, 1
          %s366 = smul.addr %s365, 64
          %s367 = scalar_lea.vmem [#allocation8], %s366
          %s368 = ssub.s32 %s27, 1
          %p369 = scmp.gt.s32.totalorder %s368, 0
          %s370 = scalar_select %p369, %s368, 0
          %372 = vsyncadd %s364, 0
          %s373 = smul.addr %s370, 16
          %s374 = smul.addr %s373, 4
          %s375 = scalar_lea.hbm %s3, %s374
          %s376 = sshll.u32 %s375, 4
          %s377 = int_to_ptr.hbm [resolvable:$true] %s376
          %s378 = sshll.u32 %s367, 4
          %s379 = int_to_ptr.vmem [resolvable:$true] %s378
          %384 = dma.hbm_to_vmem [thread:$0]  %s377, 1024, %s379, %s364, 64, 64, 4
        $region48: #{tpu_custom_call.1} parent=43 // pred_fallthru
          _
        // Predicated region
        $region49: #{tpu_custom_call.1} parent=43 // pred_check
          %p385 = pneg %p157
        $region50: #{tpu_custom_call.1} parent=43 // pred_check_branch
          %387 = sbr.rel (%p385) target = $region52
        $region51: #{tpu_custom_call.1} parent=43 // pred_region
          %s388 = ssub.s32 %s27, 1
          %p389 = scmp.gt.s32.totalorder %s388, 0
          %s390 = scalar_select %p389, %s388, 0
          %p391 = scmp.lt.s32.totalorder %s390, 1
          %s392 = scalar_select %p391, %s390, 1
          %s393 = scalar_lea.vmem %s4, %s392
          %s394 = ssub.s32 %s27, 1
          %p395 = scmp.gt.s32.totalorder %s394, 0
          %s396 = scalar_select %p395, %s394, 0
        $region52: #{tpu_custom_call.1} parent=43 // pred_fallthru
          _
      $region44: #{tpu_custom_call.1} parent=5 // pred_fallthru
        _
      %p397 = scmp.le.s32.totalorder 1, %s19
      %p398 = scmp.lt.s32.totalorder %s19, 4
      %p399 = pnand %p397, %p398
      %p400 = pneg %p399
      // Predicated region
      $region53: #{tpu_custom_call.1} parent=5 // pred_check
        _
      $region54: #{tpu_custom_call.1} parent=5 // pred_check_branch
        %402 = sbr.rel (%p399) target = $region56
      $region55: #{tpu_custom_call.1} parent=5 // pred_region
        %s403 = ssub.s32 %s19, 1
        // Predicated region
        $region57: #{tpu_custom_call.1} parent=55 // pred_check
          %p404 = pneg %p57
        $region58: #{tpu_custom_call.1} parent=55 // pred_check_branch
          %406 = sbr.rel (%p404) target = $region60
        $region59: #{tpu_custom_call.1} parent=55 // pred_region
          %408 = dma.done [#allocation4], 128
        $region60: #{tpu_custom_call.1} parent=55 // pred_fallthru
          _
        // Predicated region
        $region61: #{tpu_custom_call.1} parent=55 // pred_check
          %p409 = pneg %p78
        $region62: #{tpu_custom_call.1} parent=55 // pred_check_branch
          %411 = sbr.rel (%p409) target = $region64
        $region63: #{tpu_custom_call.1} parent=55 // pred_region
          %413 = dma.done [#allocation7], 1024
        $region64: #{tpu_custom_call.1} parent=55 // pred_fallthru
          _
        %s414 = sand.u32 %s24, 1
        %s415 = scalar_lea.sflag [#allocation4], %s414
        %s416 = sand.u32 %s118, 1
        %s417 = smul.addr %s416, 64
        %s418 = scalar_lea.vmem [#allocation8], %s417
        // Predicated region
        $region65: #{tpu_custom_call.1} parent=55 // pred_check
          %p419 = pneg %p131
        $region66: #{tpu_custom_call.1} parent=55 // pred_check_branch
          %421 = sbr.rel (%p419) target = $region68
        $region67: #{tpu_custom_call.1} parent=55 // pred_region
          %423 = dma.done %s415, 1024
        $region68: #{tpu_custom_call.1} parent=55 // pred_fallthru
          _
        // Predicated region
        $region69: #{tpu_custom_call.1} parent=55 // pred_check
          %p424 = pneg %p184
        $region70: #{tpu_custom_call.1} parent=55 // pred_check_branch
          %426 = sbr.rel (%p424) target = $region72
        $region71: #{tpu_custom_call.1} parent=55 // pred_region
          %428 = dma.done [#allocation7], 1024
        $region72: #{tpu_custom_call.1} parent=55 // pred_fallthru
          _
        // Predicated region
        $region73: #{tpu_custom_call.1} parent=55 // pred_check
          %p429 = pneg %p226
        $region74: #{tpu_custom_call.1} parent=55 // pred_check_branch
          %431 = sbr.rel (%p429) target = $region76
        $region75: #{tpu_custom_call.1} parent=55 // pred_region
          %433 = dma.done [#allocation11], 1024
        $region76: #{tpu_custom_call.1} parent=55 // pred_fallthru
          _
        %p434 = pneg %p57
        %p435 = pneg %p54
        %p436 = pneg %p78
        %p437 = pneg %p75
        %p438 = pneg %p99
        %p439 = pneg %p96
        %s440 = sand.u32 %s24, 1
        %s441 = scalar_lea.sflag [#allocation4], %s440
        %s442 = sand.u32 %s118, 1
        %s443 = smul.addr %s442, 64
        %s444 = scalar_lea.vmem [#allocation8], %s443
        %p445 = pneg %p131
        %p446 = pneg %p128
        %s447 = ssub.s32 %s29, 1
        %p448 = scmp.gt.s32.totalorder %s447, 0
        %s449 = scalar_select %p448, %s447, 0
        %p450 = scmp.lt.s32.totalorder %s449, 1
        %s451 = scalar_select %p450, %s449, 1
        %s452 = scalar_lea.vmem %s4, %s451
        %p453 = pneg %p163
        %p454 = pneg %p160
        %p455 = pneg %p184
        %p456 = pneg %p181
        %p457 = pneg %p205
        %p458 = pneg %p202
        %p459 = pneg %p226
        %p460 = pneg %p223
        %p461 = pneg %p247
        %p462 = pneg %p244
        %p463 = pneg %p273
        %p464 = pneg %p270
        %s465 = smul.u32 2, %s28
        %s466 = ssub.s32 %s29, 1
        %p467 = scmp.gt.s32.totalorder %s466, 0
        %s468 = scalar_select %p467, %s466, 0
        %s469 = ssub.s32 %s29, 1
        %p470 = scmp.gt.s32.totalorder %s469, 0
        %s471 = scalar_select %p470, %s469, 0
        %p472 = scmp.lt.s32.totalorder %s471, 1
        %s473 = scalar_select %p472, %s471, 1
        %s474 = scalar_lea.vmem %s4, %s473
        %s475 = ssub.s32 %s29, 1
        %p476 = scmp.gt.s32.totalorder %s475, 0
        %s477 = scalar_select %p476, %s475, 0
        %p478 = scmp.eq.s32.totalorder %s29, 0
        // Predicated region
        $region77: #{tpu_custom_call.1} parent=55 // pred_check
          %p479 = pneg %p478
        $region78: #{tpu_custom_call.1} parent=55 // pred_check_branch
          %481 = sbr.rel (%p479) target = $region80
        $region79: #{tpu_custom_call.1} parent=55 // pred_region
          %v482 = vld [vmem:[#allocation3] sm:$0xf]
          %v483 = vld [vmem:[#allocation3 + $0x4] sm:$0xf]
          %v484 = vld [vmem:[#allocation6] sm:$0xf]
          %v485 = vld [vmem:[#allocation6 + $0x4] sm:$0xf]
          %v486 = vld [vmem:[#allocation6 + $0x8] sm:$0xf]
          %v487 = vld [vmem:[#allocation6 + $0xc] sm:$0xf]
          %v488 = vld [vmem:[#allocation6 + $0x10] sm:$0xf]
          %v489 = vld [vmem:[#allocation6 + $0x14] sm:$0xf]
          %v490 = vld [vmem:[#allocation6 + $0x18] sm:$0xf]
          %v491 = vld [vmem:[#allocation6 + $0x1c] sm:$0xf]
          %v492 = vld [vmem:[#allocation6 + $0x20] sm:$0xf]
          %v493 = vld [vmem:[#allocation6 + $0x24] sm:$0xf]
          %v494 = vld [vmem:[#allocation6 + $0x28] sm:$0xf]
          %v495 = vld [vmem:[#allocation6 + $0x2c] sm:$0xf]
          %v496 = vld [vmem:[#allocation6 + $0x30] sm:$0xf]
          %v497 = vld [vmem:[#allocation6 + $0x34] sm:$0xf]
          %v498 = vld [vmem:[#allocation6 + $0x38] sm:$0xf]
          %v499 = vld [vmem:[#allocation6 + $0x3c] sm:$0xf]
          %v500 = vld [vmem:[%s2] sm:$0x1]
          %v502 = vperm.slane %v500, 0
          %v506 = vunpack.c.l.b16 %v482
          %v507 = vunpack.c.l.b16 %v483
          %v508 = vpack.c.b16 %v507, %v506
          %v526 = vunpack.c.l.b16 %v484
          %v527 = vunpack.c.l.b16 %v485
          %v528 = vunpack.c.l.b16 %v486
          %v529 = vunpack.c.l.b16 %v487
          %v530 = vunpack.c.l.b16 %v488
          %v531 = vunpack.c.l.b16 %v489
          %v532 = vunpack.c.l.b16 %v490
          %v533 = vunpack.c.l.b16 %v491
          %v534 = vunpack.c.l.b16 %v492
          %v535 = vunpack.c.l.b16 %v493
          %v536 = vunpack.c.l.b16 %v494
          %v537 = vunpack.c.l.b16 %v495
          %v538 = vunpack.c.l.b16 %v496
          %v539 = vunpack.c.l.b16 %v497
          %v540 = vunpack.c.l.b16 %v498
          %v541 = vunpack.c.l.b16 %v499
          %v542 = vpack.c.b16 %v527, %v526
          %v543 = vpack.c.b16 %v529, %v528
          %v544 = vpack.c.b16 %v531, %v530
          %v545 = vpack.c.b16 %v533, %v532
          %v546 = vpack.c.b16 %v535, %v534
          %v547 = vpack.c.b16 %v537, %v536
          %v548 = vpack.c.b16 %v539, %v538
          %v549 = vpack.c.b16 %v541, %v540
          %558 = vmatpush.bf16.msra.mxu0 %v549
          %559 = vmatpush.bf16.msra.mxu0 %v548
          %560 = vmatpush.bf16.msra.mxu0 %v547
          %561 = vmatpush.bf16.msra.mxu0 %v546
          %562 = vmatpush.bf16.msra.mxu0 %v545
          %563 = vmatpush.bf16.msra.mxu0 %v544
          %564 = vmatpush.bf16.msra.mxu0 %v543
          %565 = vmatpush.bf16.msra.mxu0 %v542
          %566 = vmatmul.bf16.gmra.mxu0 %v508
          %v567 = vpop.f32.mrf.mxu0
          %v568 = vadd.f32 %v502, %v567
          %v569 = vpop.f32.mrf.mxu0
          %v570 = vadd.f32 %v502, %v569
          %571 = vdwg.mxu0
          %v572 = vmul.f32 %v568, %v568
          %v573 = vmul.f32 %v570, %v570
          %v574 = vmul.f32 %v568, %v572
          %v575 = vmul.f32 %v570, %v573
          %v576 = vmul.f32 %v574, 0.044715
          %v577 = vmul.f32 %v575, 0.044715
          %v578 = vadd.f32 %v568, %v576
          %v579 = vadd.f32 %v570, %v577
          %v580 = vmul.f32 %v578, 0.7978846
          %v581 = vmul.f32 %v579, 0.7978846
          %v582 = vtanh.pop %v580
          %v583 = vtanh.pop %v581
          %v584 = vadd.f32 %v582, 1.0
          %v585 = vadd.f32 %v583, 1.0
          %v586 = vmul.f32 %v584, 0.5
          %v587 = vmul.f32 %v585, 0.5
          %v588 = vmul.f32 %v568, %v586
          %v589 = vmul.f32 %v570, %v587
          %v590 = vpack.c.bf16 %v588, %v588
          %v591 = vpack.c.bf16 %v589, %v589
          %592 = vst [vmem:[#allocation2] sm:$0xf] %v590
          %593 = vst [vmem:[#allocation2 + $0x4] sm:$0xf] %v591
        $region80: #{tpu_custom_call.1} parent=55 // pred_fallthru
          _
        %p594 = scmp.gt.s32.totalorder %s29, 0
        // Predicated region
        $region81: #{tpu_custom_call.1} parent=55 // pred_check
          %p595 = pneg %p594
        $region82: #{tpu_custom_call.1} parent=55 // pred_check_branch
          %597 = sbr.rel (%p595) target = $region84
        $region83: #{tpu_custom_call.1} parent=55 // pred_region
          %v598 = vld [vmem:[#allocation2] sm:$0xf]
          %v599 = vld [vmem:[#allocation2 + $0x4] sm:$0xf]
          %v600 = vld [vmem:[%s418] sm:$0xf]
          %v601 = vld [vmem:[%s418 + $0x4] sm:$0xf]
          %v602 = vld [vmem:[%s418 + $0x8] sm:$0xf]
          %v603 = vld [vmem:[%s418 + $0xc] sm:$0xf]
          %v604 = vld [vmem:[%s418 + $0x10] sm:$0xf]
          %v605 = vld [vmem:[%s418 + $0x14] sm:$0xf]
          %v606 = vld [vmem:[%s418 + $0x18] sm:$0xf]
          %v607 = vld [vmem:[%s418 + $0x1c] sm:$0xf]
          %v608 = vld [vmem:[%s418 + $0x20] sm:$0xf]
          %v609 = vld [vmem:[%s418 + $0x24] sm:$0xf]
          %v610 = vld [vmem:[%s418 + $0x28] sm:$0xf]
          %v611 = vld [vmem:[%s418 + $0x2c] sm:$0xf]
          %v612 = vld [vmem:[%s418 + $0x30] sm:$0xf]
          %v613 = vld [vmem:[%s418 + $0x34] sm:$0xf]
          %v614 = vld [vmem:[%s418 + $0x38] sm:$0xf]
          %v615 = vld [vmem:[%s418 + $0x3c] sm:$0xf]
          %v616 = vld [vmem:[%s474] sm:$0x1]
          %v618 = vperm.slane %v616, 0
          %v622 = vunpack.c.l.b16 %v598
          %v623 = vunpack.c.l.b16 %v599
          %v624 = vpack.c.b16 %v623, %v622
          %v642 = vunpack.c.l.b16 %v600
          %v643 = vunpack.c.l.b16 %v601
          %v644 = vunpack.c.l.b16 %v602
          %v645 = vunpack.c.l.b16 %v603
          %v646 = vunpack.c.l.b16 %v604
          %v647 = vunpack.c.l.b16 %v605
          %v648 = vunpack.c.l.b16 %v606
          %v649 = vunpack.c.l.b16 %v607
          %v650 = vunpack.c.l.b16 %v608
          %v651 = vunpack.c.l.b16 %v609
          %v652 = vunpack.c.l.b16 %v610
          %v653 = vunpack.c.l.b16 %v611
          %v654 = vunpack.c.l.b16 %v612
          %v655 = vunpack.c.l.b16 %v613
          %v656 = vunpack.c.l.b16 %v614
          %v657 = vunpack.c.l.b16 %v615
          %v658 = vpack.c.b16 %v643, %v642
          %v659 = vpack.c.b16 %v645, %v644
          %v660 = vpack.c.b16 %v647, %v646
          %v661 = vpack.c.b16 %v649, %v648
          %v662 = vpack.c.b16 %v651, %v650
          %v663 = vpack.c.b16 %v653, %v652
          %v664 = vpack.c.b16 %v655, %v654
          %v665 = vpack.c.b16 %v657, %v656
          %674 = vmatpush.bf16.msra.mxu0 %v665
          %675 = vmatpush.bf16.msra.mxu0 %v664
          %676 = vmatpush.bf16.msra.mxu0 %v663
          %677 = vmatpush.bf16.msra.mxu0 %v662
          %678 = vmatpush.bf16.msra.mxu0 %v661
          %679 = vmatpush.bf16.msra.mxu0 %v660
          %680 = vmatpush.bf16.msra.mxu0 %v659
          %681 = vmatpush.bf16.msra.mxu0 %v658
          %682 = vmatmul.bf16.gmra.mxu0 %v624
          %v683 = vpop.f32.mrf.mxu0
          %v684 = vadd.f32 %v618, %v683
          %v685 = vpop.f32.mrf.mxu0
          %v686 = vadd.f32 %v618, %v685
          %687 = vdwg.mxu0
          %v688 = vmul.f32 %v684, %v684
          %v689 = vmul.f32 %v686, %v686
          %v690 = vmul.f32 %v684, %v688
          %v691 = vmul.f32 %v686, %v689
          %v692 = vmul.f32 %v690, 0.044715
          %v693 = vmul.f32 %v691, 0.044715
          %v694 = vadd.f32 %v684, %v692
          %v695 = vadd.f32 %v686, %v693
          %v696 = vmul.f32 %v694, 0.7978846
          %v697 = vmul.f32 %v695, 0.7978846
          %v698 = vtanh.pop %v696
          %v699 = vtanh.pop %v697
          %v700 = vadd.f32 %v698, 1.0
          %v701 = vadd.f32 %v699, 1.0
          %v702 = vmul.f32 %v700, 0.5
          %v703 = vmul.f32 %v701, 0.5
          %v704 = vmul.f32 %v684, %v702
          %v705 = vmul.f32 %v686, %v703
          %v706 = vpack.c.bf16 %v704, %v704
          %v707 = vpack.c.bf16 %v705, %v705
          %708 = vst [vmem:[#allocation2] sm:$0xf] %v706
          %709 = vst [vmem:[#allocation2 + $0x4] sm:$0xf] %v707
        $region84: #{tpu_custom_call.1} parent=55 // pred_fallthru
          _
        %p710 = scmp.eq.s32.totalorder %s29, 2
        // Predicated region
        $region85: #{tpu_custom_call.1} parent=55 // pred_check
          %p711 = pneg %p710
        $region86: #{tpu_custom_call.1} parent=55 // pred_check_branch
          %713 = sbr.rel (%p711) target = $region88
        $region87: #{tpu_custom_call.1} parent=55 // pred_region
          %v714 = vld [vmem:[#allocation2] sm:$0xf]
          %v715 = vld [vmem:[#allocation2 + $0x4] sm:$0xf]
          %v716 = vunpack.c.l.bf16 %v714
          %v717 = vunpack.c.l.bf16 %v715
          %v718 = vrot.slane %v716, 4
          %v719 = vadd.f32 %v716, %v718
          %v720 = vrot.slane %v719, 2
          %v721 = vadd.f32 %v719, %v720
          %v722 = vrot.slane %v721, 1
          %v723 = vadd.f32 %v721, %v722
          %v724 = vrot.slane %v717, 4
          %v725 = vadd.f32 %v717, %v724
          %v726 = vrot.slane %v725, 2
          %v727 = vadd.f32 %v725, %v726
          %v728 = vrot.slane %v727, 1
          %v729 = vadd.f32 %v727, %v728
          %v730 = vmul.f32 %v723, 0.125
          %v731 = vmul.f32 %v729, 0.125
          %v732 = vpack.c.bf16 %v730, %v730
          %v733 = vpack.c.bf16 %v731, %v731
          %v734 = vld [vmem:[#allocation9] sm:$0xf]
          %v735 = vld [vmem:[#allocation9 + $0x4] sm:$0xf]
          %v736 = vld [vmem:[#allocation9 + $0x8] sm:$0xf]
          %v737 = vld [vmem:[#allocation9 + $0xc] sm:$0xf]
          %v738 = vld [vmem:[#allocation9 + $0x10] sm:$0xf]
          %v739 = vld [vmem:[#allocation9 + $0x14] sm:$0xf]
          %v740 = vld [vmem:[#allocation9 + $0x18] sm:$0xf]
          %v741 = vld [vmem:[#allocation9 + $0x1c] sm:$0xf]
          %v742 = vld [vmem:[#allocation9 + $0x20] sm:$0xf]
          %v743 = vld [vmem:[#allocation9 + $0x24] sm:$0xf]
          %v744 = vld [vmem:[#allocation9 + $0x28] sm:$0xf]
          %v745 = vld [vmem:[#allocation9 + $0x2c] sm:$0xf]
          %v746 = vld [vmem:[#allocation9 + $0x30] sm:$0xf]
          %v747 = vld [vmem:[#allocation9 + $0x34] sm:$0xf]
          %v748 = vld [vmem:[#allocation9 + $0x38] sm:$0xf]
          %v749 = vld [vmem:[#allocation9 + $0x3c] sm:$0xf]
          %v750 = vld [vmem:[%s6] sm:$0x1]
          %v752 = vperm.slane %v750, 0
          %v756 = vunpack.c.l.b16 %v732
          %v757 = vunpack.c.l.b16 %v733
          %vm758 = vcmask 1041409
          %v759 = vsel %vm758, %v757, %v756
          %v760 = vpack.c.b16 %v759, %v759
          %v778 = vunpack.c.l.b16 %v734
          %v779 = vunpack.c.l.b16 %v735
          %v780 = vunpack.c.l.b16 %v736
          %v781 = vunpack.c.l.b16 %v737
          %v782 = vunpack.c.l.b16 %v738
          %v783 = vunpack.c.l.b16 %v739
          %v784 = vunpack.c.l.b16 %v740
          %v785 = vunpack.c.l.b16 %v741
          %v786 = vunpack.c.l.b16 %v742
          %v787 = vunpack.c.l.b16 %v743
          %v788 = vunpack.c.l.b16 %v744
          %v789 = vunpack.c.l.b16 %v745
          %v790 = vunpack.c.l.b16 %v746
          %v791 = vunpack.c.l.b16 %v747
          %v792 = vunpack.c.l.b16 %v748
          %v793 = vunpack.c.l.b16 %v749
          %v794 = vpack.c.b16 %v779, %v778
          %v795 = vpack.c.b16 %v781, %v780
          %v796 = vpack.c.b16 %v783, %v782
          %v797 = vpack.c.b16 %v785, %v784
          %v798 = vpack.c.b16 %v787, %v786
          %v799 = vpack.c.b16 %v789, %v788
          %v800 = vpack.c.b16 %v791, %v790
          %v801 = vpack.c.b16 %v793, %v792
          %810 = vmatpush.bf16.msra.mxu0 %v801
          %811 = vmatpush.bf16.msra.mxu0 %v800
          %812 = vmatpush.bf16.msra.mxu0 %v799
          %813 = vmatpush.bf16.msra.mxu0 %v798
          %814 = vmatpush.bf16.msra.mxu0 %v797
          %815 = vmatpush.bf16.msra.mxu0 %v796
          %816 = vmatpush.bf16.msra.mxu0 %v795
          %817 = vmatpush.bf16.msra.mxu0 %v794
          %818 = vmatmul.bf16.gmra.mxu0 %v760
          %v819 = vpop.f32.mrf.mxu0
          %v820 = vadd.f32 %v752, %v819
          %v821 = vpop.f32.mrf.mxu0
          %822 = vdwg.mxu0
          %v823 = vmax.f32 %v820, 0.0
          %v824 = vpack.c.bf16 %v823, %v823
          %v825 = vld [vmem:[#allocation10] sm:$0xf]
          %v826 = vld [vmem:[#allocation10 + $0x4] sm:$0xf]
          %v827 = vld [vmem:[#allocation10 + $0x8] sm:$0xf]
          %v828 = vld [vmem:[#allocation10 + $0xc] sm:$0xf]
          %v829 = vld [vmem:[#allocation10 + $0x10] sm:$0xf]
          %v830 = vld [vmem:[#allocation10 + $0x14] sm:$0xf]
          %v831 = vld [vmem:[#allocation10 + $0x18] sm:$0xf]
          %v832 = vld [vmem:[#allocation10 + $0x1c] sm:$0xf]
          %v833 = vld [vmem:[#allocation10 + $0x20] sm:$0xf]
          %v834 = vld [vmem:[#allocation10 + $0x24] sm:$0xf]
          %v835 = vld [vmem:[#allocation10 + $0x28] sm:$0xf]
          %v836 = vld [vmem:[#allocation10 + $0x2c] sm:$0xf]
          %v837 = vld [vmem:[#allocation10 + $0x30] sm:$0xf]
          %v838 = vld [vmem:[#allocation10 + $0x34] sm:$0xf]
          %v839 = vld [vmem:[#allocation10 + $0x38] sm:$0xf]
          %v840 = vld [vmem:[#allocation10 + $0x3c] sm:$0xf]
          %v841 = vld [vmem:[%s8] sm:$0x1]
          %v843 = vperm.slane %v841, 0
          %v861 = vunpack.c.l.b16 %v825
          %v862 = vunpack.c.l.b16 %v826
          %v863 = vunpack.c.l.b16 %v827
          %v864 = vunpack.c.l.b16 %v828
          %v865 = vunpack.c.l.b16 %v829
          %v866 = vunpack.c.l.b16 %v830
          %v867 = vunpack.c.l.b16 %v831
          %v868 = vunpack.c.l.b16 %v832
          %v869 = vunpack.c.l.b16 %v833
          %v870 = vunpack.c.l.b16 %v834
          %v871 = vunpack.c.l.b16 %v835
          %v872 = vunpack.c.l.b16 %v836
          %v873 = vunpack.c.l.b16 %v837
          %v874 = vunpack.c.l.b16 %v838
          %v875 = vunpack.c.l.b16 %v839
          %v876 = vunpack.c.l.b16 %v840
          %v877 = vpack.c.b16 %v862, %v861
          %v878 = vpack.c.b16 %v864, %v863
          %v879 = vpack.c.b16 %v866, %v865
          %v880 = vpack.c.b16 %v868, %v867
          %v881 = vpack.c.b16 %v870, %v869
          %v882 = vpack.c.b16 %v872, %v871
          %v883 = vpack.c.b16 %v874, %v873
          %v884 = vpack.c.b16 %v876, %v875
          %893 = vmatpush.bf16.msra.mxu0 %v884
          %894 = vmatpush.bf16.msra.mxu0 %v883
          %895 = vmatpush.bf16.msra.mxu0 %v882
          %896 = vmatpush.bf16.msra.mxu0 %v881
          %897 = vmatpush.bf16.msra.mxu0 %v880
          %898 = vmatpush.bf16.msra.mxu0 %v879
          %899 = vmatpush.bf16.msra.mxu0 %v878
          %900 = vmatpush.bf16.msra.mxu0 %v877
          %901 = vmatmul.bf16.gmra.mxu0 %v824
          %v902 = vpop.f32.mrf.mxu0
          %v903 = vadd.f32 %v843, %v902
          %v904 = vpop.f32.mrf.mxu0
          %905 = vdwg.mxu0
          %906 = vst [vmem:[#allocation12] sm:$0x3] %v903
        $region88: #{tpu_custom_call.1} parent=55 // pred_fallthru
          _
        // Predicated region
        $region89: #{tpu_custom_call.1} parent=55 // pred_check
          %p907 = pneg %p270
        $region90: #{tpu_custom_call.1} parent=55 // pred_check_branch
          %909 = sbr.rel (%p907) target = $region92
        $region91: #{tpu_custom_call.1} parent=55 // pred_region
          %911 = vsyncadd [#allocation5], 0
          %s912 = smul.addr %s28, 2
          %s913 = scalar_lea.hbm %s9, %s912
          %s915 = sshll.u32 [#allocation12], 4
          %s916 = int_to_ptr.vmem [resolvable:$true] %s915
          %s917 = sshll.u32 %s913, 4
          %s918 = int_to_ptr.hbm [resolvable:$true] %s917
          %920 = dma.vmem_to_hbm [thread:$0]  %s916, 32, %s918, [#allocation5]
        $region92: #{tpu_custom_call.1} parent=55 // pred_fallthru
          _
        // Predicated region
        $region93: #{tpu_custom_call.1} parent=55 // pred_check
          %p921 = pneg %p270
        $region94: #{tpu_custom_call.1} parent=55 // pred_check_branch
          %923 = sbr.rel (%p921) target = $region96
        $region95: #{tpu_custom_call.1} parent=55 // pred_region
          %925 = dma.done [#allocation5], 32
        $region96: #{tpu_custom_call.1} parent=55 // pred_fallthru
          _
      $region56: #{tpu_custom_call.1} parent=5 // pred_fallthru
        _
      %p926 = scmp.le.s32.totalorder 2, %s19
      // Predicated region
      $region97: #{tpu_custom_call.1} parent=5 // pred_check
        %p927 = pneg %p926
      $region98: #{tpu_custom_call.1} parent=5 // pred_check_branch
        %929 = sbr.rel (%p927) target = $region100
      $region99: #{tpu_custom_call.1} parent=5 // pred_region
        %s930 = ssub.s32 %s19, 2
      $region100: #{tpu_custom_call.1} parent=5 // pred_fallthru
        _
    $region6: #{tpu_custom_call.1} parent=1 // loop_footer
      %s23 = sadd.s32 1, %s19
    $region7: #{tpu_custom_call.1} parent=1 // loop_footer_branch
      %18 = sbr.rel target = $region3
    $region8: #{tpu_custom_call.1} parent=1 // loop_exit
      _
    %931 = vsyncpa [#allocation4], 1
    %s932 = scalar_lea.sflag [#allocation4], 1
    %933 = vsyncpa %s932, 1
    %934 = vsyncpa [#allocation7], 1
    %935 = vsyncpa [#allocation11], 1
    %936 = vsyncpa [#allocation5], 1
    %s937 = scalar_lea.sflag [#allocation5], 1
    %938 = vsyncpa %s937, 1

</llo_original>
